<compile_context>
chip_gen: v6e
topology: v6e:2x2x1
jax: 0.10.0
libtpu: 0.0.40
codegen_flags: <defaults>
</compile_context>

<pallas_src>
import jax
import jax.numpy as jnp
import numpy as np
from jax.experimental import pallas as pl
from jax.experimental.pallas import tpu as pltpu

# ----------------------------- sizes ----------------------------------------
B = 2              # batch
D_IN = 8           # per-stage input dim (stage 1..4 share the same dim here)
H = 32             # hidden / subject-embedding dim
O = 4              # per-stage output dim
NUM_SUBJECTS = 10
NUM_TASKS = 2
NUM_STAGES = 4
OUT_LANES = 128    # lane-dense output slab width (>= O + H)


# ----------------------------- Pallas kernel --------------------------------
def _trial_kernel(x_ref, h0_ref, wz_ref, b_ref, wo_ref, bo_ref,
                  out_ref, h_scr):
    """One grid step = one stage of the trial.

    Refs (stage axis squeezed by BlockSpec):
      x_ref  (B, D_IN)   h0_ref (B, H)       wz_ref (D_IN+H, H)
      b_ref  (1, H)      wo_ref (H, O)       bo_ref (1, O)
      out_ref(B, OUT_LANES)   h_scr (B, H) VMEM scratch carrying the hidden.
    """
    # Seed the carried hidden with the subject embedding on the first stage.
    @pl.when(pl.program_id(0) == 0)
    def _init():
        h_scr[...] = h0_ref[...]

    # Merged input: [x | h]  ->  single MXU pass with K = D_IN + H.
    z = jnp.concatenate([x_ref[...], h_scr[...]], axis=1)          # (B, D_IN+H)
    pre = jnp.dot(z, wz_ref[...],
                  preferred_element_type=jnp.float32) + b_ref[...]  # (B, H)
    h_new = jnp.tanh(pre)
    h_scr[...] = h_new

    out = jnp.dot(h_new, wo_ref[...],
                  preferred_element_type=jnp.float32) + bo_ref[...]  # (B, O)

    # Lane-dense write: one full (B, 128) store per stage: [out | h_new | 0].
    pad = jnp.zeros((B, OUT_LANES - O - H), jnp.float32)
    out_ref[...] = jnp.concatenate([out, h_new, pad], axis=1)


def _trial_pallas(xs, h0, wz, b, wo, bo):
    """Run `xs.shape[0]` sequential stages in a single pallas_call.

    xs (S, B, D_IN), h0 (B, H), wz (S, D_IN+H, H), b (S, 1, H),
    wo (S, H, O), bo (S, 1, O)  ->  slab (S, B, OUT_LANES).
    """
    s_stages = xs.shape[0]
    return pl.pallas_call(
        _trial_kernel,
        out_shape=jax.ShapeDtypeStruct((s_stages, B, OUT_LANES), jnp.float32),
        grid_spec=pltpu.PrefetchScalarGridSpec(
            num_scalar_prefetch=0,
            grid=(s_stages,),
            in_specs=[
                pl.BlockSpec((None, B, D_IN), lambda s: (s, 0, 0)),      # x_k
                pl.BlockSpec((B, H), lambda s: (0, 0)),                  # h0
                pl.BlockSpec((None, D_IN + H, H), lambda s: (s, 0, 0)),  # Wz
                pl.BlockSpec((None, 1, H), lambda s: (s, 0, 0)),         # b
                pl.BlockSpec((None, H, O), lambda s: (s, 0, 0)),         # Wo
                pl.BlockSpec((None, 1, O), lambda s: (s, 0, 0)),         # bo
            ],
            out_specs=pl.BlockSpec((None, B, OUT_LANES), lambda s: (s, 0, 0)),
            scratch_shapes=[pltpu.VMEM((B, H), jnp.float32)],            # h carry
        ),
        compiler_params=pltpu.CompilerParams(
            # Stage axis carries the hidden state -> must stay sequential.
            dimension_semantics=("arbitrary",)),
    )(xs, h0, wz, b, wo, bo)


# ----------------------------- jitted wrappers -------------------------------
@jax.jit
def _run_trial(wz, b, wo, bo, sub_emb, uid, stage1inp, x2, x3, x4):
    """Whole trial (4 stages) in one kernel launch."""
    h0 = jnp.take(sub_emb, uid, axis=0)                      # (B, H) glue gather
    xs = jnp.stack([stage1inp, x2, x3, x4], axis=0)          # (S, B, D_IN)
    slab = _trial_pallas(xs, h0, wz, b, wo, bo)              # (S, B, 128)
    outs = slab[:, :, :O]                                    # (S, B, O)
    h_final = slab[-1, :, O:O + H]                           # (B, H)
    return outs, h_final


@jax.jit
def _run_step(wz_s, b_s, wo_s, bo_s, x, h):
    """Single stage (compatibility path for the stateful forward() API)."""
    slab = _trial_pallas(x[None], h, wz_s[None], b_s[None],
                         wo_s[None], bo_s[None])
    return slab[0, :, O:O + H], slab[0, :, :O]               # (h_new, out)


# ----------------------------- parameters -----------------------------------
def init_params(key):
    """Deterministic synthetic parameters mirroring SimModel's submodules."""
    keys = jax.random.split(key, 1 + NUM_TASKS * NUM_STAGES * 5)
    it = iter(keys)
    sub_emb = jax.random.normal(next(it), (NUM_SUBJECTS, H), jnp.float32) * 0.1
    nets = []
    for _ in range(NUM_TASKS):
        wz_l, b_l, wo_l, bo_l = [], [], [], []
        for _ in range(NUM_STAGES):
            wx = jax.random.normal(next(it), (D_IN, H), jnp.float32) * 0.1
            wh = jax.random.normal(next(it), (H, H), jnp.float32) * 0.1
            wz_l.append(jnp.concatenate([wx, wh], axis=0))   # (D_IN+H, H)
            b_l.append(jax.random.normal(next(it), (1, H), jnp.float32) * 0.1)
            wo_l.append(jax.random.normal(next(it), (H, O), jnp.float32) * 0.1)
            bo_l.append(jax.random.normal(next(it), (1, O), jnp.float32) * 0.1)
        nets.append({"wz": jnp.stack(wz_l), "b": jnp.stack(b_l),
                     "wo": jnp.stack(wo_l), "bo": jnp.stack(bo_l)})
    return {"sub_emb": sub_emb, "parallel_nets": nets}


# ----------------------------- SimModel -------------------------------------
class SimModelPallas:
    """Trial simulator matching SimModel.forward semantics."""

    def __init__(self, params):
        self.sub_emb = params["sub_emb"]
        self.parallel_nets = params["parallel_nets"]
        self.hidden_state = None
        self.end_trial()

    def end_trial(self):
        self.next_step = 1

    # Fused fast path: all 4 steps of a trial in ONE pallas_call / ONE dispatch.
    def run_trial(self, task_id, stage1inp, uid, x2, x3, x4):
        net = self.parallel_nets[task_id]
        outs, h = _run_trial(net["wz"], net["b"], net["wo"], net["bo"],
                             self.sub_emb, uid, stage1inp, x2, x3, x4)
        self.hidden_state = h
        self.next_step = NUM_STAGES + 1
        return [outs[s] for s in range(NUM_STAGES)]

    # Step-by-step compatibility path (same math as the PyTorch forward()).
    def forward(self, task_id, x, step):
        assert self.next_step == step
        net = self.parallel_nets[task_id]
        s = step - 1
        if step == 1:
            stage1inp, uid = x
            h = jnp.take(self.sub_emb, uid, axis=0)
            xin = stage1inp
        elif step in (2, 3, 4):
            h = self.hidden_state
            xin = x
        else:
            raise ValueError(f"bad step {step}")
        self.hidden_state, out = _run_step(net["wz"][s], net["b"][s],
                                           net["wo"][s], net["bo"][s], xin, h)
        self.next_step += 1
        return out


# ----------------------------- main ------------------------------------------
if __name__ == "__main__":
    key = jax.random.PRNGKey(0)
    pkey, k1, k2, k3, k4, kuid = jax.random.split(key, 6)

    params = init_params(pkey)
    model = SimModelPallas(params)

    stage1inp = jax.random.normal(k1, (B, D_IN), jnp.float32)
    uid = jax.random.randint(kuid, (B,), 0, NUM_SUBJECTS)
    x2 = jax.random.normal(k2, (B, D_IN), jnp.float32)
    x3 = jax.random.normal(k3, (B, D_IN), jnp.float32)
    x4 = jax.random.normal(k4, (B, D_IN), jnp.float32)

    task_id = 0

    # Fused fast path: one kernel launch for the whole trial.
    outs_fused = model.run_trial(task_id, stage1inp, uid, x2, x3, x4)
    h_fused = model.hidden_state
    model.end_trial()

    # Step-by-step path (mirrors the original stateful forward API).
    o1 = model.forward(task_id, (stage1inp, uid), 1)
    o2 = model.forward(task_id, x2, 2)
    o3 = model.forward(task_id, x3, 3)
    o4 = model.forward(task_id, x4, 4)
    h_step = model.hidden_state
    model.end_trial()

    jax.block_until_ready((outs_fused, h_fused, o1, o2, o3, o4, h_step))

    # Pure-JAX reference (same RNN-cell math) for correctness.
    net0 = params["parallel_nets"][task_id]
    h_ref = params["sub_emb"][uid]
    outs_ref = []
    for si, xk in enumerate([stage1inp, x2, x3, x4]):
        z_ref = jnp.concatenate([xk, h_ref], axis=1)
        h_ref = jnp.tanh(z_ref @ net0["wz"][si] + net0["b"][si])
        outs_ref.append(h_ref @ net0["wo"][si] + net0["bo"][si])

    step_outs = [o1, o2, o3, o4]
    for si in range(NUM_STAGES):
        np.testing.assert_allclose(np.asarray(outs_fused[si]),
                                   np.asarray(outs_ref[si]),
                                   rtol=1e-5, atol=1e-5)
        np.testing.assert_allclose(np.asarray(step_outs[si]),
                                   np.asarray(outs_ref[si]),
                                   rtol=1e-5, atol=1e-5)
    np.testing.assert_allclose(np.asarray(h_fused), np.asarray(h_ref),
                               rtol=1e-5, atol=1e-5)
    np.testing.assert_allclose(np.asarray(h_step), np.asarray(h_ref),
                               rtol=1e-5, atol=1e-5)

    assert outs_fused[0].shape == (B, O) and outs_fused[3].shape == (B, O)
    assert h_fused.shape == (B, H)
    print("KERNEL_OK")
</pallas_src>

<mosaic_0001>
module attributes {stable_mosaic.version = 11 : i64} {
  func.func @_trial_kernel(%arg0: i32, %arg1: memref<1x2x8xf32, #tpu.memory_space<vmem>>, %arg2: memref<2x32xf32, #tpu.memory_space<vmem>>, %arg3: memref<1x40x32xf32, #tpu.memory_space<vmem>>, %arg4: memref<1x1x32xf32, #tpu.memory_space<vmem>>, %arg5: memref<1x32x4xf32, #tpu.memory_space<vmem>>, %arg6: memref<1x1x4xf32, #tpu.memory_space<vmem>>, %arg7: memref<1x2x128xf32, #tpu.memory_space<vmem>>, %arg8: memref<2x32xf32, #tpu.memory_space<vmem>>) attributes {dimension_semantics = [#tpu.dimension_semantics<arbitrary>], iteration_bounds = array<i64: 4>, scalar_prefetch = 0 : i64, scratch_operands = 1 : i64, tpu.core_type = #tpu.core_type<tc>, window_params = [{transform_indices = @transform_0, window_bounds = array<i64: 1, 2, 8>}, {pipeline_mode = #tpu.pipeline_mode<synchronous>, transform_indices = @transform_1, window_bounds = array<i64: 2, 32>}, {transform_indices = @transform_2, window_bounds = array<i64: 1, 40, 32>}, {transform_indices = @transform_3, window_bounds = array<i64: 1, 1, 32>}, {transform_indices = @transform_4, window_bounds = array<i64: 1, 32, 4>}, {transform_indices = @transform_5, window_bounds = array<i64: 1, 1, 4>}, {transform_indices = @transform_6, window_bounds = array<i64: 1, 2, 128>}]} {
    %c0_i32 = arith.constant 0 : i32
    %0 = arith.cmpi eq, %arg0, %c0_i32 : i32
    %1 = arith.extui %0 : i1 to i32
    %c0_i32_0 = arith.constant 0 : i32
    %2 = arith.cmpi ne, %1, %c0_i32_0 : i32
    scf.if %2 {
      %c0_24 = arith.constant 0 : index
      %c0_25 = arith.constant 0 : index
      %28 = vector.load %arg2[%c0_24, %c0_25] : memref<2x32xf32, #tpu.memory_space<vmem>>, vector<2x32xf32>
      %c0_26 = arith.constant 0 : index
      %c0_27 = arith.constant 0 : index
      %29 = vector.load %arg8[%c0_26, %c0_27] : memref<2x32xf32, #tpu.memory_space<vmem>>, vector<2x32xf32>
      tpu.vector_store %arg8[%c0_26, %c0_27], %28 {strides = array<i32>} : memref<2x32xf32, #tpu.memory_space<vmem>>, vector<2x32xf32>,
    } else {
    }
    %c0 = arith.constant 0 : index
    %c0_1 = arith.constant 0 : index
    %c0_2 = arith.constant 0 : index
    %3 = vector.load %arg1[%c0, %c0_1, %c0_2] : memref<1x2x8xf32, #tpu.memory_space<vmem>>, vector<1x2x8xf32>
    %4 = vector.shape_cast %3 : vector<1x2x8xf32> to vector<2x8xf32>
    %c0_3 = arith.constant 0 : index
    %c0_4 = arith.constant 0 : index
    %5 = vector.load %arg8[%c0_3, %c0_4] : memref<2x32xf32, #tpu.memory_space<vmem>>, vector<2x32xf32>
    %6 = tpu.concatenate %4, %5 in 1 : vector<2x8xf32>, vector<2x32xf32> -> vector<2x40xf32>
    %c0_5 = arith.constant 0 : index
    %c0_6 = arith.constant 0 : index
    %c0_7 = arith.constant 0 : index
    %7 = vector.load %arg3[%c0_5, %c0_6, %c0_7] : memref<1x40x32xf32, #tpu.memory_space<vmem>>, vector<1x40x32xf32>
    %8 = vector.shape_cast %7 : vector<1x40x32xf32> to vector<40x32xf32>
    %cst = arith.constant dense<0.000000e+00> : vector<2x32xf32>
    %9 = tpu.matmul %6, %8, %cst {dimension_numbers = #tpu.dot_dimension_numbers<[1], [0], [0], [1], [0, 0, 1, 1], [], []>} : vector<2x40xf32>, vector<40x32xf32>, vector<2x32xf32> -> vector<2x32xf32>
    %c0_8 = arith.constant 0 : index
    %c0_9 = arith.constant 0 : index
    %c0_10 = arith.constant 0 : index
    %10 = vector.load %arg4[%c0_8, %c0_9, %c0_10] : memref<1x1x32xf32, #tpu.memory_space<vmem>>, vector<1x1x32xf32>
    %11 = vector.shape_cast %10 : vector<1x1x32xf32> to vector<1x32xf32>
    %12 = vector.broadcast %11 : vector<1x32xf32> to vector<2x32xf32>
    %13 = arith.addf %9, %12 : vector<2x32xf32>
    %14 = math.tanh %13 : vector<2x32xf32>
    %c0_11 = arith.constant 0 : index
    %c0_12 = arith.constant 0 : index
    %15 = vector.load %arg8[%c0_11, %c0_12] : memref<2x32xf32, #tpu.memory_space<vmem>>, vector<2x32xf32>
    tpu.vector_store %arg8[%c0_11, %c0_12], %14 {strides = array<i32>} : memref<2x32xf32, #tpu.memory_space<vmem>>, vector<2x32xf32>,
    %c0_13 = arith.constant 0 : index
    %c0_14 = arith.constant 0 : index
    %c0_15 = arith.constant 0 : index
    %16 = vector.load %arg5[%c0_13, %c0_14, %c0_15] : memref<1x32x4xf32, #tpu.memory_space<vmem>>, vector<1x32x4xf32>
    %17 = vector.shape_cast %16 : vector<1x32x4xf32> to vector<32x4xf32>
    %cst_16 = arith.constant dense<0.000000e+00> : vector<2x4xf32>
    %18 = tpu.matmul %14, %17, %cst_16 {dimension_numbers = #tpu.dot_dimension_numbers<[1], [0], [0], [1], [0, 0, 1, 1], [], []>} : vector<2x32xf32>, vector<32x4xf32>, vector<2x4xf32> -> vector<2x4xf32>
    %c0_17 = arith.constant 0 : index
    %c0_18 = arith.constant 0 : index
    %c0_19 = arith.constant 0 : index
    %19 = vector.load %arg6[%c0_17, %c0_18, %c0_19] : memref<1x1x4xf32, #tpu.memory_space<vmem>>, vector<1x1x4xf32>
    %20 = vector.shape_cast %19 : vector<1x1x4xf32> to vector<1x4xf32>
    %21 = vector.broadcast %20 : vector<1x4xf32> to vector<2x4xf32>
    %22 = arith.addf %18, %21 : vector<2x4xf32>
    %cst_20 = arith.constant 0.000000e+00 : f32
    %23 = vector.broadcast %cst_20 : f32 to vector<2x92xf32>
    %24 = tpu.concatenate %22, %14, %23 in 1 : vector<2x4xf32>, vector<2x32xf32>, vector<2x92xf32> -> vector<2x128xf32>
    %c0_21 = arith.constant 0 : index
    %c0_22 = arith.constant 0 : index
    %c0_23 = arith.constant 0 : index
    %25 = vector.load %arg7[%c0_21, %c0_22, %c0_23] : memref<1x2x128xf32, #tpu.memory_space<vmem>>, vector<1x2x128xf32>
    %26 = vector.shape_cast %25 : vector<1x2x128xf32> to vector<2x128xf32>
    %27 = vector.shape_cast %24 : vector<2x128xf32> to vector<1x2x128xf32>
    tpu.vector_store %arg7[%c0_21, %c0_22, %c0_23], %27 {strides = array<i32>} : memref<1x2x128xf32, #tpu.memory_space<vmem>>, vector<1x2x128xf32>,
    return
  }
  func.func @transform_0(%arg0: i32) -> (i32, i32, i32) {
    %c0_i32 = arith.constant 0 : i32
    %c0_i32_0 = arith.constant 0 : i32
    %c0_i32_1 = arith.constant 0 : i32
    return %arg0, %c0_i32, %c0_i32_0 : i32, i32, i32
  }
  func.func @transform_1(%arg0: i32) -> (i32, i32) {
    %c0_i32 = arith.constant 0 : i32
    %c0_i32_0 = arith.constant 0 : i32
    %c0_i32_1 = arith.constant 0 : i32
    return %c0_i32, %c0_i32_0 : i32, i32
  }
  func.func @transform_2(%arg0: i32) -> (i32, i32, i32) {
    %c0_i32 = arith.constant 0 : i32
    %c0_i32_0 = arith.constant 0 : i32
    %c0_i32_1 = arith.constant 0 : i32
    return %arg0, %c0_i32, %c0_i32_0 : i32, i32, i32
  }
  func.func @transform_3(%arg0: i32) -> (i32, i32, i32) {
    %c0_i32 = arith.constant 0 : i32
    %c0_i32_0 = arith.constant 0 : i32
    %c0_i32_1 = arith.constant 0 : i32
    return %arg0, %c0_i32, %c0_i32_0 : i32, i32, i32
  }
  func.func @transform_4(%arg0: i32) -> (i32, i32, i32) {
    %c0_i32 = arith.constant 0 : i32
    %c0_i32_0 = arith.constant 0 : i32
    %c0_i32_1 = arith.constant 0 : i32
    return %arg0, %c0_i32, %c0_i32_0 : i32, i32, i32
  }
  func.func @transform_5(%arg0: i32) -> (i32, i32, i32) {
    %c0_i32 = arith.constant 0 : i32
    %c0_i32_0 = arith.constant 0 : i32
    %c0_i32_1 = arith.constant 0 : i32
    return %arg0, %c0_i32, %c0_i32_0 : i32, i32, i32
  }
  func.func @transform_6(%arg0: i32) -> (i32, i32, i32) {
    %c0_i32 = arith.constant 0 : i32
    %c0_i32_0 = arith.constant 0 : i32
    %c0_i32_1 = arith.constant 0 : i32
    return %arg0, %c0_i32, %c0_i32_0 : i32, i32, i32
  }
}

</mosaic_0001>

<llo_original>
// kernel: _run_trial.1
$region0: #{_run_trial.1}
  #allocation0 [shape = 'u32[]', space=smem, size = 0x4, offset = 0x4, fixed_abs, tag = 'smem constant byte address 0x4 - core index']
  #allocation1 [shape = 'u32[144,128]{1,0:T(1,128)}', space=vmem, size = 0x12000, scoped, tag = 'internal scratch']
  #allocation2 [shape = 'f32[2,32]{1,0:T(2,128)}', space=vmem, size = 0x400, scoped, tag = 'scratch operand']
  %s0 = inlined_call_operand.vmem [shape: f32[4,2,8], index: 0, kind: input, shape index: {}]
  %s1 = inlined_call_operand.vmem [shape: f32[2,32], index: 1, kind: input, shape index: {}]
  %s2 = inlined_call_operand.vmem [shape: f32[4,40,32], index: 2, kind: input, shape index: {}]
  %s3 = inlined_call_operand.vmem [shape: f32[4,1,32], index: 3, kind: input, shape index: {}]
  %s4 = inlined_call_operand.vmem [shape: f32[4,32,4], index: 4, kind: input, shape index: {}]
  %s5 = inlined_call_operand.vmem [shape: f32[4,1,4], index: 5, kind: input, shape index: {}]
  %s6 = inlined_call_operand.vmem [shape: f32[4,2,128], index: 6, kind: output, shape index: {}]
  %s7 = sld [smem:[#allocation0]]
  $region61: #{_run_trial.1} parent=0
    _
  %s9 = ssub.s32 1, %s7
  %s10 = scalar_select 0, %s9, %s7
  loop: start=0, step=1, limit=6
  $region2: #{_run_trial.1} parent=0 // loop_pre_header
    _
  $region3: #{_run_trial.1} parent=0 // loop_header
    %s12 = sphi 0, %s16
    %p13 = scmp.ge.s32.totalorder %s12, 6
    %s22 = sphi 0, %s24
    %s25 = sphi 0, %s22
    %s26 = sphi 0, %s25
    %s42 = sphi 0, %s26
    %s46 = sphi 0, %s46
    %s48 = sphi 0, %s46
    %s49 = sphi 0, %s48
    %s63 = sphi 0, %s49
    %s69 = sphi 0, %s71
    %s72 = sphi 0, %s69
    %s73 = sphi 0, %s72
    %s89 = sphi 0, %s73
    %s95 = sphi 0, %s97
    %s98 = sphi 0, %s95
    %s99 = sphi 0, %s98
    %s115 = sphi 0, %s99
    %s121 = sphi 0, %s123
    %s124 = sphi 0, %s121
    %s125 = sphi 0, %s124
    %s141 = sphi 0, %s125
    %s147 = sphi 0, %s149
    %s150 = sphi 0, %s147
    %s151 = sphi 0, %s150
    %s167 = sphi 0, %s151
    %s173 = sphi 0, %s175
    %s176 = sphi 0, %s173
    %s177 = sphi 0, %s176
    %s193 = sphi 0, %s177
  $region4: #{_run_trial.1} parent=0 // loop_header_branch
    %15 = sbr.rel (%p13) target = $region8
  $region5: #{_run_trial.1} parent=0 // loop_body
    %s17 = ssub.s32 %s12, 1
    %s18 = ssub.s32 %s12, 2
    %s19 = sadd.s32 %s12, 1
    %s20 = ssub.s32 %s12, %s19
    %p21 = scmp.eq.s32.totalorder %s20, 0
    %s23 = sadd.s32 %s22, 1
    %s24 = scalar_select %p21, %s22, %s23
    %p27 = pneg %p21
    %p28 = scmp.eq.s32.totalorder %s12, 3
    %p29 = por %p27, %p28
    %p30 = scmp.ne.s32.totalorder %s22, %s25
    %p31 = scmp.eq.s32.totalorder %s12, 0
    %p32 = por %p30, %p31
    %p33 = scmp.ne.s32.totalorder %s22, %s25
    %p34 = scmp.eq.s32.totalorder %s17, 3
    %p35 = por %p33, %p34
    %p36 = scmp.ne.s32.totalorder %s25, %s26
    %p37 = scmp.eq.s32.totalorder %s17, 0
    %p38 = por %p36, %p37
    %p39 = scmp.ne.s32.totalorder %s25, %s26
    %p40 = scmp.eq.s32.totalorder %s18, 3
    %p41 = por %p39, %p40
    %p43 = scmp.ne.s32.totalorder %s26, %s42
    %p44 = scmp.eq.s32.totalorder %s18, 0
    %p45 = por %p43, %p44
    %s47 = sadd.s32 %s46, 1
    %p50 = scmp.eq.s32.totalorder %s12, 3
    %p51 = scmp.ne.s32.totalorder %s46, %s48
    %p52 = scmp.eq.s32.totalorder %s12, 0
    %p53 = por %p51, %p52
    %p54 = scmp.ne.s32.totalorder %s46, %s48
    %p55 = scmp.eq.s32.totalorder %s17, 3
    %p56 = por %p54, %p55
    %p57 = scmp.ne.s32.totalorder %s48, %s49
    %p58 = scmp.eq.s32.totalorder %s17, 0
    %p59 = por %p57, %p58
    %p60 = scmp.ne.s32.totalorder %s48, %s49
    %p61 = scmp.eq.s32.totalorder %s18, 3
    %p62 = por %p60, %p61
    %p64 = scmp.ne.s32.totalorder %s49, %s63
    %p65 = scmp.eq.s32.totalorder %s18, 0
    %p66 = por %p64, %p65
    %s67 = ssub.s32 %s12, %s19
    %p68 = scmp.eq.s32.totalorder %s67, 0
    %s70 = sadd.s32 %s69, 1
    %s71 = scalar_select %p68, %s69, %s70
    %p74 = pneg %p68
    %p75 = scmp.eq.s32.totalorder %s12, 3
    %p76 = por %p74, %p75
    %p77 = scmp.ne.s32.totalorder %s69, %s72
    %p78 = scmp.eq.s32.totalorder %s12, 0
    %p79 = por %p77, %p78
    %p80 = scmp.ne.s32.totalorder %s69, %s72
    %p81 = scmp.eq.s32.totalorder %s17, 3
    %p82 = por %p80, %p81
    %p83 = scmp.ne.s32.totalorder %s72, %s73
    %p84 = scmp.eq.s32.totalorder %s17, 0
    %p85 = por %p83, %p84
    %p86 = scmp.ne.s32.totalorder %s72, %s73
    %p87 = scmp.eq.s32.totalorder %s18, 3
    %p88 = por %p86, %p87
    %p90 = scmp.ne.s32.totalorder %s73, %s89
    %p91 = scmp.eq.s32.totalorder %s18, 0
    %p92 = por %p90, %p91
    %s93 = ssub.s32 %s12, %s19
    %p94 = scmp.eq.s32.totalorder %s93, 0
    %s96 = sadd.s32 %s95, 1
    %s97 = scalar_select %p94, %s95, %s96
    %p100 = pneg %p94
    %p101 = scmp.eq.s32.totalorder %s12, 3
    %p102 = por %p100, %p101
    %p103 = scmp.ne.s32.totalorder %s95, %s98
    %p104 = scmp.eq.s32.totalorder %s12, 0
    %p105 = por %p103, %p104
    %p106 = scmp.ne.s32.totalorder %s95, %s98
    %p107 = scmp.eq.s32.totalorder %s17, 3
    %p108 = por %p106, %p107
    %p109 = scmp.ne.s32.totalorder %s98, %s99
    %p110 = scmp.eq.s32.totalorder %s17, 0
    %p111 = por %p109, %p110
    %p112 = scmp.ne.s32.totalorder %s98, %s99
    %p113 = scmp.eq.s32.totalorder %s18, 3
    %p114 = por %p112, %p113
    %p116 = scmp.ne.s32.totalorder %s99, %s115
    %p117 = scmp.eq.s32.totalorder %s18, 0
    %p118 = por %p116, %p117
    %s119 = ssub.s32 %s12, %s19
    %p120 = scmp.eq.s32.totalorder %s119, 0
    %s122 = sadd.s32 %s121, 1
    %s123 = scalar_select %p120, %s121, %s122
    %p126 = pneg %p120
    %p127 = scmp.eq.s32.totalorder %s12, 3
    %p128 = por %p126, %p127
    %p129 = scmp.ne.s32.totalorder %s121, %s124
    %p130 = scmp.eq.s32.totalorder %s12, 0
    %p131 = por %p129, %p130
    %p132 = scmp.ne.s32.totalorder %s121, %s124
    %p133 = scmp.eq.s32.totalorder %s17, 3
    %p134 = por %p132, %p133
    %p135 = scmp.ne.s32.totalorder %s124, %s125
    %p136 = scmp.eq.s32.totalorder %s17, 0
    %p137 = por %p135, %p136
    %p138 = scmp.ne.s32.totalorder %s124, %s125
    %p139 = scmp.eq.s32.totalorder %s18, 3
    %p140 = por %p138, %p139
    %p142 = scmp.ne.s32.totalorder %s125, %s141
    %p143 = scmp.eq.s32.totalorder %s18, 0
    %p144 = por %p142, %p143
    %s145 = ssub.s32 %s12, %s19
    %p146 = scmp.eq.s32.totalorder %s145, 0
    %s148 = sadd.s32 %s147, 1
    %s149 = scalar_select %p146, %s147, %s148
    %p152 = pneg %p146
    %p153 = scmp.eq.s32.totalorder %s12, 3
    %p154 = por %p152, %p153
    %p155 = scmp.ne.s32.totalorder %s147, %s150
    %p156 = scmp.eq.s32.totalorder %s12, 0
    %p157 = por %p155, %p156
    %p158 = scmp.ne.s32.totalorder %s147, %s150
    %p159 = scmp.eq.s32.totalorder %s17, 3
    %p160 = por %p158, %p159
    %p161 = scmp.ne.s32.totalorder %s150, %s151
    %p162 = scmp.eq.s32.totalorder %s17, 0
    %p163 = por %p161, %p162
    %p164 = scmp.ne.s32.totalorder %s150, %s151
    %p165 = scmp.eq.s32.totalorder %s18, 3
    %p166 = por %p164, %p165
    %p168 = scmp.ne.s32.totalorder %s151, %s167
    %p169 = scmp.eq.s32.totalorder %s18, 0
    %p170 = por %p168, %p169
    %s171 = ssub.s32 %s12, %s19
    %p172 = scmp.eq.s32.totalorder %s171, 0
    %s174 = sadd.s32 %s173, 1
    %s175 = scalar_select %p172, %s173, %s174
    %p178 = pneg %p172
    %p179 = scmp.eq.s32.totalorder %s12, 3
    %p180 = por %p178, %p179
    %p181 = scmp.ne.s32.totalorder %s173, %s176
    %p182 = scmp.eq.s32.totalorder %s12, 0
    %p183 = por %p181, %p182
    %p184 = scmp.ne.s32.totalorder %s173, %s176
    %p185 = scmp.eq.s32.totalorder %s17, 3
    %p186 = por %p184, %p185
    %p187 = scmp.ne.s32.totalorder %s176, %s177
    %p188 = scmp.eq.s32.totalorder %s17, 0
    %p189 = por %p187, %p188
    %p190 = scmp.ne.s32.totalorder %s176, %s177
    %p191 = scmp.eq.s32.totalorder %s18, 3
    %p192 = por %p190, %p191
    %p194 = scmp.ne.s32.totalorder %s177, %s193
    %p195 = scmp.eq.s32.totalorder %s18, 0
    %p196 = por %p194, %p195
    %p197 = scmp.le.s32.totalorder 1, %s12
    %p198 = scmp.lt.s32.totalorder %s12, 5
    %p199 = pnand %p197, %p198
    %p200 = pneg %p199
    // Predicated region
    $region9: #{_run_trial.1} parent=5 // pred_check
      _
    $region10: #{_run_trial.1} parent=5 // pred_check_branch
      %202 = sbr.rel (%p199) target = $region12
    $region11: #{_run_trial.1} parent=5 // pred_region
      %s203 = ssub.s32 %s12, 1
      // Predicated region
      $region13: #{_run_trial.1} parent=11 // pred_check
        %p204 = pneg %p59
      $region14: #{_run_trial.1} parent=11 // pred_check_branch
        %206 = sbr.rel (%p204) target = $region16
      $region15: #{_run_trial.1} parent=11 // pred_region
        _
      $region16: #{_run_trial.1} parent=11 // pred_fallthru
        _
    $region12: #{_run_trial.1} parent=5 // pred_fallthru
      _
    %p207 = scmp.lt.s32.totalorder %s12, 4
    // Predicated region
    $region17: #{_run_trial.1} parent=5 // pred_check
      %p208 = pneg %p207
    $region18: #{_run_trial.1} parent=5 // pred_check_branch
      %210 = sbr.rel (%p208) target = $region20
    $region19: #{_run_trial.1} parent=5 // pred_region
      // Predicated region
      $region21: #{_run_trial.1} parent=19 // pred_check
        %p211 = pneg %p32
      $region22: #{_run_trial.1} parent=19 // pred_check_branch
        %213 = sbr.rel (%p211) target = $region24
      $region23: #{_run_trial.1} parent=19 // pred_region
        %p214 = scmp.lt.s32.totalorder %s12, 3
        %s215 = scalar_select %p214, %s12, 3
        %s216 = smul.addr %s215, 2
        %s217 = scalar_lea.vmem %s0, %s216
      $region24: #{_run_trial.1} parent=19 // pred_fallthru
        _
      // Predicated region
      $region25: #{_run_trial.1} parent=19 // pred_check
        %p218 = pneg %p79
      $region26: #{_run_trial.1} parent=19 // pred_check_branch
        %220 = sbr.rel (%p218) target = $region28
      $region27: #{_run_trial.1} parent=19 // pred_region
        %p221 = scmp.lt.s32.totalorder %s12, 3
        %s222 = scalar_select %p221, %s12, 3
        %s223 = smul.addr %s222, 5
        %s224 = smul.addr %s223, 8
        %s225 = scalar_lea.vmem %s2, %s224
      $region28: #{_run_trial.1} parent=19 // pred_fallthru
        _
      // Predicated region
      $region29: #{_run_trial.1} parent=19 // pred_check
        %p226 = pneg %p105
      $region30: #{_run_trial.1} parent=19 // pred_check_branch
        %228 = sbr.rel (%p226) target = $region32
      $region31: #{_run_trial.1} parent=19 // pred_region
        %p229 = scmp.lt.s32.totalorder %s12, 3
        %s230 = scalar_select %p229, %s12, 3
        %s231 = scalar_lea.vmem %s3, %s230
      $region32: #{_run_trial.1} parent=19 // pred_fallthru
        _
      // Predicated region
      $region33: #{_run_trial.1} parent=19 // pred_check
        %p232 = pneg %p131
      $region34: #{_run_trial.1} parent=19 // pred_check_branch
        %234 = sbr.rel (%p232) target = $region36
      $region35: #{_run_trial.1} parent=19 // pred_region
        %p235 = scmp.lt.s32.totalorder %s12, 3
        %s236 = scalar_select %p235, %s12, 3
        %s237 = smul.addr %s236, 4
        %s238 = smul.addr %s237, 8
        %s239 = scalar_lea.vmem %s4, %s238
      $region36: #{_run_trial.1} parent=19 // pred_fallthru
        _
      // Predicated region
      $region37: #{_run_trial.1} parent=19 // pred_check
        %p240 = pneg %p157
      $region38: #{_run_trial.1} parent=19 // pred_check_branch
        %242 = sbr.rel (%p240) target = $region40
      $region39: #{_run_trial.1} parent=19 // pred_region
        %p243 = scmp.lt.s32.totalorder %s12, 3
        %s244 = scalar_select %p243, %s12, 3
        %s245 = scalar_lea.vmem %s5, %s244
      $region40: #{_run_trial.1} parent=19 // pred_fallthru
        _
    $region20: #{_run_trial.1} parent=5 // pred_fallthru
      _
    %p246 = scmp.le.s32.totalorder 1, %s12
    %p247 = scmp.lt.s32.totalorder %s12, 5
    %p248 = pnand %p246, %p247
    %p249 = pneg %p248
    // Predicated region
    $region41: #{_run_trial.1} parent=5 // pred_check
      _
    $region42: #{_run_trial.1} parent=5 // pred_check_branch
      %251 = sbr.rel (%p248) target = $region44
    $region43: #{_run_trial.1} parent=5 // pred_region
      %s252 = ssub.s32 %s12, 1
      %p253 = scmp.lt.s32.totalorder %s17, 3
      %s254 = scalar_select %p253, %s17, 3
      %s255 = smul.addr %s254, 2
      %s256 = scalar_lea.vmem %s0, %s255
      %p257 = pneg %p38
      %p258 = pneg %p35
      %p259 = pneg %p59
      %p260 = pneg %p56
      %p261 = scmp.lt.s32.totalorder %s17, 3
      %s262 = scalar_select %p261, %s17, 3
      %s263 = smul.addr %s262, 5
      %s264 = smul.addr %s263, 8
      %s265 = scalar_lea.vmem %s2, %s264
      %p266 = pneg %p85
      %p267 = pneg %p82
      %p268 = scmp.lt.s32.totalorder %s17, 3
      %s269 = scalar_select %p268, %s17, 3
      %s270 = scalar_lea.vmem %s3, %s269
      %p271 = pneg %p111
      %p272 = pneg %p108
      %p273 = scmp.lt.s32.totalorder %s17, 3
      %s274 = scalar_select %p273, %s17, 3
      %s275 = smul.addr %s274, 4
      %s276 = smul.addr %s275, 8
      %s277 = scalar_lea.vmem %s4, %s276
      %p278 = pneg %p137
      %p279 = pneg %p134
      %p280 = scmp.lt.s32.totalorder %s17, 3
      %s281 = scalar_select %p280, %s17, 3
      %s282 = scalar_lea.vmem %s5, %s281
      %p283 = pneg %p163
      %p284 = pneg %p160
      %p285 = pneg %p189
      %p286 = pneg %p186
      %p287 = scmp.lt.s32.totalorder %s17, 3
      %s288 = scalar_select %p287, %s17, 3
      %s289 = smul.addr %s288, 2
      %s290 = scalar_lea.vmem %s6, %s289
      %p291 = scmp.lt.s32.totalorder %s17, 3
      %s292 = scalar_select %p291, %s17, 3
      %s293 = smul.addr %s292, 2
      %s294 = scalar_lea.vmem %s0, %s293
      %p295 = scmp.lt.s32.totalorder %s17, 3
      %s296 = scalar_select %p295, %s17, 3
      %s297 = smul.addr %s296, 5
      %s298 = smul.addr %s297, 8
      %s299 = scalar_lea.vmem %s2, %s298
      %p300 = scmp.lt.s32.totalorder %s17, 3
      %s301 = scalar_select %p300, %s17, 3
      %s302 = scalar_lea.vmem %s3, %s301
      %p303 = scmp.lt.s32.totalorder %s17, 3
      %s304 = scalar_select %p303, %s17, 3
      %s305 = smul.addr %s304, 4
      %s306 = smul.addr %s305, 8
      %s307 = scalar_lea.vmem %s4, %s306
      %p308 = scmp.lt.s32.totalorder %s17, 3
      %s309 = scalar_select %p308, %s17, 3
      %s310 = scalar_lea.vmem %s5, %s309
      %p311 = scmp.lt.s32.totalorder %s17, 3
      %s312 = scalar_select %p311, %s17, 3
      %s313 = smul.addr %s312, 2
      %s314 = scalar_lea.vmem %s6, %s313
      %p315 = scmp.eq.s32.totalorder %s17, 0
      // Predicated region
      $region45: #{_run_trial.1} parent=43 // pred_check
        %p316 = pneg %p315
      $region46: #{_run_trial.1} parent=43 // pred_check_branch
        %318 = sbr.rel (%p316) target = $region48
      $region47: #{_run_trial.1} parent=43 // pred_region
        %v319 = vld [vmem:[%s1] sm:$0x3]
        %vm320 = vcmask 254976
        %321 = vst.msk [vmem:[#allocation2] sm:$0x3] %vm320, %v319
      $region48: #{_run_trial.1} parent=43 // pred_fallthru
        _
      %v322 = vld [vmem:[%s294] sm:$0x3]
      %v323 = vld [vmem:[#allocation2] sm:$0x3]
      %325 = vrot.lane.b32.xlu0 %v323, 8
      %v326 = vpop.permute.xlu0 %325
      %vm328 = vcmask 64512
      %v329 = vsel %vm328, %v322, %v326
      %v330 = vld [vmem:[%s299] sm:$0xff]
      %v331 = vld [vmem:[%s299 + $0x8] sm:$0xff]
      %v332 = vld [vmem:[%s299 + $0x10] sm:$0xff]
      %v333 = vld [vmem:[%s299 + $0x18] sm:$0xff]
      %v334 = vld [vmem:[%s299 + $0x20] sm:$0xff]
      %v335 = vld [vmem:[%s302] sm:$0x1]
      %v337 = vlaneseq
      %v338 = vshrl.u32 %v337, 7
      %v339 = vsub.s32 0, %v338
      %v340 = vrot.slane %v335, %v339
      %vm342 = vcmask 326656
      %v344 = vsel %vm342, %v329, 0
      %346 = vmatprep.subr.mxu0 0.0
      %347 = vmatpush1.msra.mxu0 0.0
      %348 = vmatprep.subr.mxu0 0.0
      %349 = vmatpush1.msra.mxu0 0.0
      %350 = vmatprep.subr.mxu0 0.0
      %351 = vmatpush1.msra.mxu0 0.0
      %352 = vmatprep.subr.mxu0 0.0
      %353 = vmatpush1.msra.mxu0 0.0
      %354 = vmatprep.subr.mxu0 0.0
      %355 = vmatpush1.msra.mxu0 0.0
      %356 = vmatprep.subr.mxu0 0.0
      %357 = vmatpush1.msra.mxu0 0.0
      %358 = vmatprep.subr.mxu0 0.0
      %359 = vmatpush1.msra.mxu0 0.0
      %360 = vmatprep.subr.mxu0 0.0
      %361 = vmatpush1.msra.mxu0 0.0
      %362 = vmatprep.subr.mxu0 0.0
      %363 = vmatpush1.msra.mxu0 0.0
      %364 = vmatprep.subr.mxu0 0.0
      %365 = vmatpush1.msra.mxu0 0.0
      %366 = vmatprep.subr.mxu0 0.0
      %367 = vmatpush1.msra.mxu0 0.0
      %368 = vmatprep.subr.mxu0 0.0
      %369 = vmatpush1.msra.mxu0 %v334
      %370 = vmatprep.subr.mxu0 0.0
      %371 = vmatpush1.msra.mxu0 %v333
      %372 = vmatprep.subr.mxu0 0.0
      %373 = vmatpush1.msra.mxu0 %v332
      %374 = vmatprep.subr.mxu0 0.0
      %375 = vmatpush1.msra.mxu0 %v331
      %376 = vmatprep.subr.mxu0 0.0
      %377 = vmatpush1.msra.mxu0 %v330
      %378 = vmatprep.subr.mxu0 0.0
      %379 = vmatpush2.msra.mxu0 0.0
      %380 = vmatprep.subr.mxu0 0.0
      %381 = vmatpush2.msra.mxu0 0.0
      %382 = vmatprep.subr.mxu0 0.0
      %383 = vmatpush2.msra.mxu0 0.0
      %384 = vmatprep.subr.mxu0 0.0
      %385 = vmatpush2.msra.mxu0 0.0
      %386 = vmatprep.subr.mxu0 0.0
      %387 = vmatpush2.msra.mxu0 0.0
      %388 = vmatprep.subr.mxu0 0.0
      %389 = vmatpush2.msra.mxu0 0.0
      %390 = vmatprep.subr.mxu0 0.0
      %391 = vmatpush2.msra.mxu0 0.0
      %392 = vmatprep.subr.mxu0 0.0
      %393 = vmatpush2.msra.mxu0 0.0
      %394 = vmatprep.subr.mxu0 0.0
      %395 = vmatpush2.msra.mxu0 0.0
      %396 = vmatprep.subr.mxu0 0.0
      %397 = vmatpush2.msra.mxu0 0.0
      %398 = vmatprep.subr.mxu0 0.0
      %399 = vmatpush2.msra.mxu0 0.0
      %400 = vmatprep.subr.mxu0 0.0
      %401 = vmatpush2.msra.mxu0 0.0
      %402 = vmatprep.subr.mxu0 0.0
      %403 = vmatpush2.msra.mxu0 0.0
      %404 = vmatprep.subr.mxu0 0.0
      %405 = vmatpush2.msra.mxu0 0.0
      %406 = vmatprep.subr.mxu0 0.0
      %407 = vmatpush2.msra.mxu0 0.0
      %408 = vmatprep.subr.mxu0 0.0
      %409 = vmatpush2.msra.mxu0 0.0
      %410 = vmatprep.mubr.f32.mxu0 0.0
      %411 = vmatmul.mubr.f32.gmra.mxu0 %v344
      %v412 = vpop.f32.mrf.mxu0
      %v413 = vadd.f32 %v340, %v412
      %v414 = vpop.f32.mrf.mxu0
      %415 = vdwg.mxu0
      %v416 = vtanh.pop %v413
      %vm417 = vcmask 254976
      %418 = vst.msk [vmem:[#allocation2] sm:$0x3] %vm417, %v416
      %v419 = vld [vmem:[%s307] sm:$0xff]
      %v420 = vld [vmem:[%s307 + $0x8] sm:$0xff]
      %v421 = vld [vmem:[%s307 + $0x10] sm:$0xff]
      %v422 = vld [vmem:[%s307 + $0x18] sm:$0xff]
      %v423 = vld [vmem:[%s310] sm:$0x1]
      %v425 = vlaneseq
      %v426 = vshrl.u32 %v425, 7
      %v427 = vsub.s32 0, %v426
      %v428 = vrot.slane %v423, %v427
      %vm430 = vcmask 261120
      %v432 = vsel %vm430, %v416, 0
      %434 = vmatprep.subr.mxu0 0.0
      %435 = vmatpush1.msra.mxu0 0.0
      %436 = vmatprep.subr.mxu0 0.0
      %437 = vmatpush1.msra.mxu0 0.0
      %438 = vmatprep.subr.mxu0 0.0
      %439 = vmatpush1.msra.mxu0 0.0
      %440 = vmatprep.subr.mxu0 0.0
      %441 = vmatpush1.msra.mxu0 0.0
      %442 = vmatprep.subr.mxu0 0.0
      %443 = vmatpush1.msra.mxu0 0.0
      %444 = vmatprep.subr.mxu0 0.0
      %445 = vmatpush1.msra.mxu0 0.0
      %446 = vmatprep.subr.mxu0 0.0
      %447 = vmatpush1.msra.mxu0 0.0
      %448 = vmatprep.subr.mxu0 0.0
      %449 = vmatpush1.msra.mxu0 0.0
      %450 = vmatprep.subr.mxu0 0.0
      %451 = vmatpush1.msra.mxu0 0.0
      %452 = vmatprep.subr.mxu0 0.0
      %453 = vmatpush1.msra.mxu0 0.0
      %454 = vmatprep.subr.mxu0 0.0
      %455 = vmatpush1.msra.mxu0 0.0
      %456 = vmatprep.subr.mxu0 0.0
      %457 = vmatpush1.msra.mxu0 0.0
      %458 = vmatprep.subr.mxu0 0.0
      %459 = vmatpush1.msra.mxu0 %v422
      %460 = vmatprep.subr.mxu0 0.0
      %461 = vmatpush1.msra.mxu0 %v421
      %462 = vmatprep.subr.mxu0 0.0
      %463 = vmatpush1.msra.mxu0 %v420
      %464 = vmatprep.subr.mxu0 0.0
      %465 = vmatpush1.msra.mxu0 %v419
      %466 = vmatprep.subr.mxu0 0.0
      %467 = vmatpush2.msra.mxu0 0.0
      %468 = vmatprep.subr.mxu0 0.0
      %469 = vmatpush2.msra.mxu0 0.0
      %470 = vmatprep.subr.mxu0 0.0
      %471 = vmatpush2.msra.mxu0 0.0
      %472 = vmatprep.subr.mxu0 0.0
      %473 = vmatpush2.msra.mxu0 0.0
      %474 = vmatprep.subr.mxu0 0.0
      %475 = vmatpush2.msra.mxu0 0.0
      %476 = vmatprep.subr.mxu0 0.0
      %477 = vmatpush2.msra.mxu0 0.0
      %478 = vmatprep.subr.mxu0 0.0
      %479 = vmatpush2.msra.mxu0 0.0
      %480 = vmatprep.subr.mxu0 0.0
      %481 = vmatpush2.msra.mxu0 0.0
      %482 = vmatprep.subr.mxu0 0.0
      %483 = vmatpush2.msra.mxu0 0.0
      %484 = vmatprep.subr.mxu0 0.0
      %485 = vmatpush2.msra.mxu0 0.0
      %486 = vmatprep.subr.mxu0 0.0
      %487 = vmatpush2.msra.mxu0 0.0
      %488 = vmatprep.subr.mxu0 0.0
      %489 = vmatpush2.msra.mxu0 0.0
      %490 = vmatprep.subr.mxu0 0.0
      %491 = vmatpush2.msra.mxu0 0.0
      %492 = vmatprep.subr.mxu0 0.0
      %493 = vmatpush2.msra.mxu0 0.0
      %494 = vmatprep.subr.mxu0 0.0
      %495 = vmatpush2.msra.mxu0 0.0
      %496 = vmatprep.subr.mxu0 0.0
      %497 = vmatpush2.msra.mxu0 0.0
      %498 = vmatprep.mubr.f32.mxu0 0.0
      %499 = vmatmul.mubr.f32.gmra.mxu0 %v432
      %v500 = vpop.f32.mrf.mxu0
      %v501 = vadd.f32 %v428, %v500
      %v502 = vpop.f32.mrf.mxu0
      %503 = vdwg.mxu0
      %504 = vrot.lane.b32.xlu0 %v416, 4
      %v505 = vpop.permute.xlu0 %504
      %vm507 = vcmask 31744
      %v508 = vsel %vm507, %v501, %v505
      %vm509 = vcmask 293888
      %v510 = vsel %vm509, %v508, 0.0
      %511 = vst [vmem:[%s314] sm:$0x3] %v510
      %p512 = scmp.lt.s32.totalorder %s17, 3
      %s513 = scalar_select %p512, %s17, 3
      %s514 = smul.addr %s513, 2
      %s515 = scalar_lea.vmem %s6, %s514
      // Predicated region
      $region49: #{_run_trial.1} parent=43 // pred_check
        %p516 = pneg %p186
      $region50: #{_run_trial.1} parent=43 // pred_check_branch
        %518 = sbr.rel (%p516) target = $region52
      $region51: #{_run_trial.1} parent=43 // pred_region
        _
      $region52: #{_run_trial.1} parent=43 // pred_fallthru
        _
    $region44: #{_run_trial.1} parent=5 // pred_fallthru
      _
    %p519 = scmp.le.s32.totalorder 2, %s12
    // Predicated region
    $region53: #{_run_trial.1} parent=5 // pred_check
      %p520 = pneg %p519
    $region54: #{_run_trial.1} parent=5 // pred_check_branch
      %522 = sbr.rel (%p520) target = $region56
    $region55: #{_run_trial.1} parent=5 // pred_region
      %s523 = ssub.s32 %s12, 2
      // Predicated region
      $region57: #{_run_trial.1} parent=55 // pred_check
        %p524 = pneg %p192
      $region58: #{_run_trial.1} parent=55 // pred_check_branch
        %526 = sbr.rel (%p524) target = $region60
      $region59: #{_run_trial.1} parent=55 // pred_region
        %p527 = scmp.lt.s32.totalorder %s18, 3
        %s528 = scalar_select %p527, %s18, 3
        %s529 = smul.addr %s528, 2
        %s530 = scalar_lea.vmem %s6, %s529
      $region60: #{_run_trial.1} parent=55 // pred_fallthru
        _
    $region56: #{_run_trial.1} parent=5 // pred_fallthru
      _
  $region6: #{_run_trial.1} parent=0 // loop_footer
    %s16 = sadd.s32 1, %s12
  $region7: #{_run_trial.1} parent=0 // loop_footer_branch
    %11 = sbr.rel target = $region3
  $region8: #{_run_trial.1} parent=0 // loop_exit
    _

</llo_original>
